<compile_context>
chip_gen: v5e
topology: v5e:2x2
jax: 0.10.0
libtpu: 0.0.40
codegen_flags: <defaults>
</compile_context>

<pallas_src>
import functools

import jax
import jax.numpy as jnp
import numpy as np
from jax.experimental import pallas as pl
from jax.experimental.pallas import tpu as pltpu


def _gcam_kernel(xq_ref, kproj_ref, wq_ref, bq_ref, wc_ref, bc_ref, o_ref,
                 q_s, acc_s, *, n_key, n_group, hw, scale_over_b, mm_dtype,
                 key_chunk, approx_recip):
    """One (query-group i, key-batch j) grid step.

    xq_ref    : (G, HW, Cp)  f32 query row block of the token slab (resident in j)
    kproj_ref : (1, HW, Cp)  precomputed key projection for key batch j (streams)
    wq/wc_ref : (Cp, Cp)     transposed 1x1-conv weights (matmul dtype)
    bq/bc_ref : (1, Cp)      f32 biases
    o_ref     : (G, HW, Cp)  output block (written on the last key step)
    q_s       : (G*HW, Cp)   matmul-dtype scratch — query projection
    acc_s     : (G*HW, 1)    f32 scratch — running sum of per-key-batch maxes
    """
    j = pl.program_id(1)
    cp = xq_ref.shape[-1]
    m_rows = n_group * hw

    @pl.when(j == 0)
    def _init():
        # Query projection (1x1 conv == per-token channel matmul on the MXU).
        xq = xq_ref[...].reshape(m_rows, cp)
        q_s[...] = (jnp.dot(xq.astype(mm_dtype), wq_ref[...],
                            preferred_element_type=jnp.float32)
                    + bq_ref[...]).astype(q_s.dtype)
        acc_s[...] = jnp.zeros_like(acc_s)

    # Affinity block against this key batch, processed in key-token chunks so
    # the (G*HW, chunk) f32 temp stays bounded; reduce each chunk immediately
    # with a lane-dim max and accumulate the mean-over-key-batches online.
    q = q_s[...]                                                  # (G*HW, Cp)
    m_part = None
    for c0 in range(0, hw, key_chunk):
        c1 = min(hw, c0 + key_chunk)
        k_c = kproj_ref[0, c0:c1, :]                              # (chunk, Cp)
        a = jax.lax.dot_general(q, k_c, (((1,), (1,)), ((), ())),
                                preferred_element_type=jnp.float32)
        blk = jnp.max(a, axis=-1, keepdims=True)                  # (G*HW, 1)
        m_part = blk if m_part is None else jnp.maximum(m_part, blk)
    acc_s[...] += m_part

    @pl.when(j == n_key - 1)
    def _finish():
        # Per-batch softmax over HW positions (segmented over the G groups),
        # then rescale x and apply conv6 — one matmul, one lane-dense store.
        w = (acc_s[...] * scale_over_b).reshape(n_group, hw, 1)
        e = jnp.exp(w - jnp.max(w, axis=1, keepdims=True))
        p = e * pl.reciprocal(jnp.sum(e, axis=1, keepdims=True),
                              approx=approx_recip)                # (G, HW, 1)
        xq = xq_ref[...]                                          # (G, HW, Cp)
        xp = (xq * p).reshape(m_rows, cp)
        out = (jnp.dot(xp.astype(mm_dtype), wc_ref[...],
                       preferred_element_type=jnp.float32)
               + bc_ref[...])                                     # (G*HW, Cp)
        o_ref[...] = out.reshape(n_group, hw, cp).astype(o_ref.dtype)


def gcam_forward(x_nchw, wq, bq, wk, bk, wc, bc, *,
                 matmul_dtype=jnp.bfloat16, q_group=None, key_chunk=512,
                 approx_reciprocal=None):
    """x_nchw: (B, C, H, W); conv weights (C_out, C_in); biases (C,)."""
    B, C, H, W = x_nchw.shape
    HW = H * W

    if approx_reciprocal is None:
        # EUP approx reciprocal on the fast path; exact on the f32 path.
        approx_reciprocal = jnp.dtype(matmul_dtype) != jnp.dtype(jnp.float32)

    if q_group is None:
        # Fill the MXU M dim (~512 rows) per step while keeping blocks small.
        # NOTE(v7x): for larger B prefer keeping B // q_group >= 2 so the
        # "parallel" grid axis can feed both TensorCores.
        target = max(1, 512 // HW)
        q_group = max(g for g in range(1, B + 1) if B % g == 0 and g <= target)
    if B % q_group != 0:
        raise ValueError(f"q_group={q_group} must divide B={B}")
    G = int(q_group)

    # Pad channels up to a lane-dense multiple of 128 (no-op when C % 128 == 0,
    # e.g. the module's real channel_in = 512).  Zero padding is exact: padded
    # channels contribute nothing to any matmul and are sliced off at the end.
    Cp = ((C + 127) // 128) * 128
    pad = Cp - C

    x3 = jnp.transpose(x_nchw, (0, 2, 3, 1)).reshape(B, HW, C).astype(jnp.float32)
    # Key projection (1x1 conv) precomputed once with XLA, streamed as
    # matmul_dtype blocks instead of being recomputed B times in-kernel.
    kproj = (jnp.einsum("bnc,dc->bnd", x3, wk.astype(jnp.float32))
             + bk.reshape(1, 1, C).astype(jnp.float32))

    wqT, wcT = wq.T, wc.T
    bq2, bc2 = bq.reshape(1, C), bc.reshape(1, C)
    if pad:
        x3 = jnp.pad(x3, ((0, 0), (0, 0), (0, pad)))
        kproj = jnp.pad(kproj, ((0, 0), (0, 0), (0, pad)))
        wqT, wcT = (jnp.pad(m, ((0, pad), (0, pad))) for m in (wqT, wcT))
        bq2, bc2 = (jnp.pad(b, ((0, 0), (0, pad))) for b in (bq2, bc2))
    kproj = kproj.astype(matmul_dtype)
    wqT, wcT = (m.astype(matmul_dtype) for m in (wqT, wcT))
    bq2, bc2 = (b.astype(jnp.float32) for b in (bq2, bc2))

    kernel = functools.partial(
        _gcam_kernel,
        n_key=B, n_group=G, hw=HW,
        scale_over_b=float((1.0 / (C ** 0.5)) / B),
        mm_dtype=matmul_dtype,
        key_chunk=int(key_chunk),
        approx_recip=bool(approx_reciprocal))

    tok_q = pl.BlockSpec((G, HW, Cp), lambda i, j: (i, 0, 0))   # resident over j
    tok_k = pl.BlockSpec((1, HW, Cp), lambda i, j: (j, 0, 0))   # streams over j
    mat = pl.BlockSpec((Cp, Cp), lambda i, j: (0, 0))           # weights resident
    vec = pl.BlockSpec((1, Cp), lambda i, j: (0, 0))            # biases resident

    # Explicit scoped-VMEM budget sized from the actual working set.
    mm_bytes = jnp.dtype(matmul_dtype).itemsize
    chunk = min(HW, int(key_chunk))
    est_bytes = (2 * G * HW * Cp * 4            # query blocks (double-buffered, f32)
                 + 2 * G * HW * Cp * 4          # output blocks (double-buffered, f32)
                 + 2 * HW * Cp * mm_bytes       # streamed key-projection blocks
                 + 2 * 2 * Cp * Cp * mm_bytes   # wq, wc (double-buffered)
                 + G * HW * Cp * mm_bytes       # q_s scratch
                 + G * HW * chunk * 4           # affinity temp
                 + 4 * Cp * 4)                  # biases
    vmem_limit = int(min(max(2 * est_bytes, 32 << 20), 64 << 20))

    out = pl.pallas_call(
        kernel,
        out_shape=jax.ShapeDtypeStruct((B, HW, Cp), jnp.float32),
        grid_spec=pltpu.PrefetchScalarGridSpec(
            num_scalar_prefetch=0,
            grid=(B // G, B),                    # (query-group, key-batch)
            in_specs=[tok_q, tok_k,
                      mat, vec,                  # query transform (W^T, b)
                      mat, vec],                 # conv6           (W^T, b)
            out_specs=tok_q,
            scratch_shapes=[pltpu.VMEM((G * HW, Cp), matmul_dtype),  # q proj
                            pltpu.VMEM((G * HW, 1), jnp.float32)]),  # running acc
        compiler_params=pltpu.CompilerParams(
            dimension_semantics=("parallel", "arbitrary"),
            vmem_limit_bytes=vmem_limit),
    )(x3, kproj, wqT, bq2, wcT, bc2)

    out = out[:, :, :C].reshape(B, H, W, C)
    return jnp.transpose(out, (0, 3, 1, 2))


def gcam_ref(x_nchw, wq, bq, wk, bk, wc, bc):
    """Pure-JAX reference mirroring the PyTorch forward exactly (f32)."""
    B, C, H, W = x_nchw.shape
    HW = H * W
    N = B * HW
    xf = jnp.transpose(x_nchw, (0, 2, 3, 1)).reshape(N, C)
    q = xf @ wq.T + bq
    k = xf @ wk.T + bk
    a = q @ k.T                                       # (N, N)
    w = a.reshape(N, B, HW).max(-1).mean(-1)          # (N,)
    w = jax.nn.softmax(w.reshape(B, HW) / (C ** 0.5), axis=-1).reshape(N, 1)
    out = (xf * w) @ wc.T + bc
    return jnp.transpose(out.reshape(B, H, W, C), (0, 3, 1, 2))


if __name__ == "__main__":
    # Small shapes consistent with the module (channel_in=C).
    B, C, H, W = 2, 32, 8, 8

    key = jax.random.PRNGKey(0)
    kx, k1, k2, k3, k4, k5, k6 = jax.random.split(key, 7)
    x = jax.random.normal(kx, (B, C, H, W), jnp.float32)

    # Deterministic synthetic init (msra-style std for 1x1 conv weights).
    std = (2.0 / C) ** 0.5
    wq = jax.random.normal(k1, (C, C), jnp.float32) * std   # query_transform.weight
    wk = jax.random.normal(k2, (C, C), jnp.float32) * std   # key_transform.weight
    wc = jax.random.normal(k3, (C, C), jnp.float32) * std   # conv6.weight
    bq = jax.random.normal(k4, (C,), jnp.float32) * 0.01
    bk = jax.random.normal(k5, (C,), jnp.float32) * 0.01
    bc = jax.random.normal(k6, (C,), jnp.float32) * 0.01

    ref = np.asarray(gcam_ref(x, wq, bq, wk, bk, wc, bc))

    # Exact-arithmetic regression: f32 MXU path, ungrouped and grouped queries.
    for g in (1, 2):
        out = jax.block_until_ready(
            gcam_forward(x, wq, bq, wk, bk, wc, bc,
                         matmul_dtype=jnp.float32, q_group=g))
        np.testing.assert_allclose(np.asarray(out), ref, rtol=1e-4, atol=1e-4)

    # Default fast path: bf16 MXU operands + approx reciprocal (looser tol).
    out = jax.block_until_ready(gcam_forward(x, wq, bq, wk, bk, wc, bc))
    np.testing.assert_allclose(np.asarray(out), ref, rtol=5e-2, atol=5e-3)

    print("KERNEL_OK")
</pallas_src>

<mosaic_0001>
module attributes {stable_mosaic.version = 11 : i64} {
  func.func @_gcam_kernel(%arg0: i32, %arg1: i32, %arg2: memref<1x64x128xf32, #tpu.memory_space<vmem>>, %arg3: memref<1x64x128xf32, #tpu.memory_space<vmem>>, %arg4: memref<128x128xf32, #tpu.memory_space<vmem>>, %arg5: memref<1x128xf32, #tpu.memory_space<vmem>>, %arg6: memref<128x128xf32, #tpu.memory_space<vmem>>, %arg7: memref<1x128xf32, #tpu.memory_space<vmem>>, %arg8: memref<1x64x128xf32, #tpu.memory_space<vmem>>, %arg9: memref<64x128xf32, #tpu.memory_space<vmem>>, %arg10: memref<64x1xf32, #tpu.memory_space<vmem>>) attributes {dimension_semantics = [#tpu.dimension_semantics<parallel>, #tpu.dimension_semantics<arbitrary>], iteration_bounds = array<i64: 2, 2>, scalar_prefetch = 0 : i64, scratch_operands = 2 : i64, tpu.core_type = #tpu.core_type<tc>, window_params = [{transform_indices = @transform_0, window_bounds = array<i64: 1, 64, 128>}, {transform_indices = @transform_1, window_bounds = array<i64: 1, 64, 128>}, {pipeline_mode = #tpu.pipeline_mode<synchronous>, transform_indices = @transform_2, window_bounds = array<i64: 128, 128>}, {pipeline_mode = #tpu.pipeline_mode<synchronous>, transform_indices = @transform_3, window_bounds = array<i64: 1, 128>}, {pipeline_mode = #tpu.pipeline_mode<synchronous>, transform_indices = @transform_4, window_bounds = array<i64: 128, 128>}, {pipeline_mode = #tpu.pipeline_mode<synchronous>, transform_indices = @transform_5, window_bounds = array<i64: 1, 128>}, {transform_indices = @transform_6, window_bounds = array<i64: 1, 64, 128>}]} {
    %c0_i32 = arith.constant 0 : i32
    %0 = arith.cmpi eq, %arg1, %c0_i32 : i32
    %1 = arith.extui %0 : i1 to i32
    %c0_i32_0 = arith.constant 0 : i32
    %2 = arith.cmpi ne, %1, %c0_i32_0 : i32
    scf.if %2 {
      %c0_11 = arith.constant 0 : index
      %c0_12 = arith.constant 0 : index
      %c0_13 = arith.constant 0 : index
      %15 = vector.load %arg2[%c0_11, %c0_12, %c0_13] : memref<1x64x128xf32, #tpu.memory_space<vmem>>, vector<1x64x128xf32>
      %16 = vector.shape_cast %15 : vector<1x64x128xf32> to vector<64x128xf32>
      %c0_14 = arith.constant 0 : index
      %c0_15 = arith.constant 0 : index
      %17 = vector.load %arg4[%c0_14, %c0_15] : memref<128x128xf32, #tpu.memory_space<vmem>>, vector<128x128xf32>
      %cst_16 = arith.constant dense<0.000000e+00> : vector<64x128xf32>
      %18 = tpu.matmul %16, %17, %cst_16 {dimension_numbers = #tpu.dot_dimension_numbers<[1], [0], [0], [1], [0, 0, 1, 1], [], []>} : vector<64x128xf32>, vector<128x128xf32>, vector<64x128xf32> -> vector<64x128xf32>
      %c0_17 = arith.constant 0 : index
      %c0_18 = arith.constant 0 : index
      %19 = vector.load %arg5[%c0_17, %c0_18] : memref<1x128xf32, #tpu.memory_space<vmem>>, vector<1x128xf32>
      %20 = vector.broadcast %19 : vector<1x128xf32> to vector<64x128xf32>
      %21 = arith.addf %18, %20 : vector<64x128xf32>
      %c0_19 = arith.constant 0 : index
      %c0_20 = arith.constant 0 : index
      %22 = vector.load %arg9[%c0_19, %c0_20] : memref<64x128xf32, #tpu.memory_space<vmem>>, vector<64x128xf32>
      tpu.vector_store %arg9[%c0_19, %c0_20], %21 {strides = array<i32>} : memref<64x128xf32, #tpu.memory_space<vmem>>, vector<64x128xf32>,
      %cst_21 = arith.constant 0.000000e+00 : f32
      %23 = vector.broadcast %cst_21 : f32 to vector<64x1xf32>
      %c0_22 = arith.constant 0 : index
      %c0_23 = arith.constant 0 : index
      %24 = vector.load %arg10[%c0_22, %c0_23] : memref<64x1xf32, #tpu.memory_space<vmem>>, vector<64x1xf32>
      tpu.vector_store %arg10[%c0_22, %c0_23], %23 {strides = array<i32>} : memref<64x1xf32, #tpu.memory_space<vmem>>, vector<64x1xf32>,
    } else {
    }
    %c0 = arith.constant 0 : index
    %c0_1 = arith.constant 0 : index
    %3 = vector.load %arg9[%c0, %c0_1] : memref<64x128xf32, #tpu.memory_space<vmem>>, vector<64x128xf32>
    %c0_2 = arith.constant 0 : index
    %c0_3 = arith.constant 0 : index
    %c0_4 = arith.constant 0 : index
    %4 = vector.load %arg3[%c0_2, %c0_3, %c0_4] : memref<1x64x128xf32, #tpu.memory_space<vmem>>, vector<1x64x128xf32>
    %5 = vector.shape_cast %4 : vector<1x64x128xf32> to vector<64x128xf32>
    %cst = arith.constant dense<0.000000e+00> : vector<64x64xf32>
    %6 = tpu.matmul %3, %5, %cst {dimension_numbers = #tpu.dot_dimension_numbers<[1], [1], [0], [0], [0, 0, 1, 0], [], []>} : vector<64x128xf32>, vector<64x128xf32>, vector<64x64xf32> -> vector<64x64xf32>
    %cst_5 = arith.constant dense<0xFF800000> : vector<64xf32>
    %7 = vector.multi_reduction <maximumf>, %6, %cst_5 [1] : vector<64x64xf32> to vector<64xf32>
    %8 = vector.shape_cast %7 : vector<64xf32> to vector<64x1xf32>
    %c0_6 = arith.constant 0 : index
    %c0_7 = arith.constant 0 : index
    %9 = vector.load %arg10[%c0_6, %c0_7] : memref<64x1xf32, #tpu.memory_space<vmem>>, vector<64x1xf32>
    %10 = arith.addf %9, %8 : vector<64x1xf32>
    %c0_8 = arith.constant 0 : index
    %c0_9 = arith.constant 0 : index
    %11 = vector.load %arg10[%c0_8, %c0_9] : memref<64x1xf32, #tpu.memory_space<vmem>>, vector<64x1xf32>
    tpu.vector_store %arg10[%c0_8, %c0_9], %10 {strides = array<i32>} : memref<64x1xf32, #tpu.memory_space<vmem>>, vector<64x1xf32>,
    %c1_i32 = arith.constant 1 : i32
    %12 = arith.cmpi eq, %arg1, %c1_i32 : i32
    %13 = arith.extui %12 : i1 to i32
    %c0_i32_10 = arith.constant 0 : i32
    %14 = arith.cmpi ne, %13, %c0_i32_10 : i32
    scf.if %14 {
      %c0_11 = arith.constant 0 : index
      %c0_12 = arith.constant 0 : index
      %15 = vector.load %arg10[%c0_11, %c0_12] : memref<64x1xf32, #tpu.memory_space<vmem>>, vector<64x1xf32>
      %cst_13 = arith.constant 0.0883883461 : f32
      %16 = vector.broadcast %cst_13 : f32 to vector<64x1xf32>
      %17 = arith.mulf %15, %16 : vector<64x1xf32>
      %18 = vector.shape_cast %17 : vector<64x1xf32> to vector<1x64x1xf32>
      %cst_14 = arith.constant dense<0xFF800000> : vector<1x1xf32>
      %19 = vector.multi_reduction <maximumf>, %18, %cst_14 [1] : vector<1x64x1xf32> to vector<1x1xf32>
      %20 = vector.shape_cast %19 : vector<1x1xf32> to vector<1x1x1xf32>
      %21 = vector.broadcast %20 : vector<1x1x1xf32> to vector<1x64x1xf32>
      %22 = arith.subf %18, %21 : vector<1x64x1xf32>
      %23 = math.exp %22 : vector<1x64x1xf32>
      %cst_15 = arith.constant dense<0.000000e+00> : vector<1x1xf32>
      %24 = vector.multi_reduction <add>, %23, %cst_15 [1] : vector<1x64x1xf32> to vector<1x1xf32>
      %25 = vector.shape_cast %24 : vector<1x1xf32> to vector<1x1x1xf32>
      %26 = tpu.reciprocal %25 : vector<1x1x1xf32> -> vector<1x1x1xf32>
      %27 = vector.broadcast %26 : vector<1x1x1xf32> to vector<1x64x1xf32>
      %28 = arith.mulf %23, %27 : vector<1x64x1xf32>
      %c0_16 = arith.constant 0 : index
      %c0_17 = arith.constant 0 : index
      %c0_18 = arith.constant 0 : index
      %29 = vector.load %arg2[%c0_16, %c0_17, %c0_18] : memref<1x64x128xf32, #tpu.memory_space<vmem>>, vector<1x64x128xf32>
      %30 = vector.broadcast %28 : vector<1x64x1xf32> to vector<1x64x128xf32>
      %31 = arith.mulf %29, %30 : vector<1x64x128xf32>
      %32 = vector.shape_cast %31 : vector<1x64x128xf32> to vector<64x128xf32>
      %c0_19 = arith.constant 0 : index
      %c0_20 = arith.constant 0 : index
      %33 = vector.load %arg6[%c0_19, %c0_20] : memref<128x128xf32, #tpu.memory_space<vmem>>, vector<128x128xf32>
      %cst_21 = arith.constant dense<0.000000e+00> : vector<64x128xf32>
      %34 = tpu.matmul %32, %33, %cst_21 {dimension_numbers = #tpu.dot_dimension_numbers<[1], [0], [0], [1], [0, 0, 1, 1], [], []>} : vector<64x128xf32>, vector<128x128xf32>, vector<64x128xf32> -> vector<64x128xf32>
      %c0_22 = arith.constant 0 : index
      %c0_23 = arith.constant 0 : index
      %35 = vector.load %arg7[%c0_22, %c0_23] : memref<1x128xf32, #tpu.memory_space<vmem>>, vector<1x128xf32>
      %36 = vector.broadcast %35 : vector<1x128xf32> to vector<64x128xf32>
      %37 = arith.addf %34, %36 : vector<64x128xf32>
      %38 = vector.shape_cast %37 : vector<64x128xf32> to vector<1x64x128xf32>
      %c0_24 = arith.constant 0 : index
      %c0_25 = arith.constant 0 : index
      %c0_26 = arith.constant 0 : index
      %39 = vector.load %arg8[%c0_24, %c0_25, %c0_26] : memref<1x64x128xf32, #tpu.memory_space<vmem>>, vector<1x64x128xf32>
      tpu.vector_store %arg8[%c0_24, %c0_25, %c0_26], %38 {strides = array<i32>} : memref<1x64x128xf32, #tpu.memory_space<vmem>>, vector<1x64x128xf32>,
    } else {
    }
    return
  }
  func.func @transform_0(%arg0: i32, %arg1: i32) -> (i32, i32, i32) {
    %c0_i32 = arith.constant 0 : i32
    %c0_i32_0 = arith.constant 0 : i32
    %c0_i32_1 = arith.constant 0 : i32
    return %arg0, %c0_i32, %c0_i32_0 : i32, i32, i32
  }
  func.func @transform_1(%arg0: i32, %arg1: i32) -> (i32, i32, i32) {
    %c0_i32 = arith.constant 0 : i32
    %c0_i32_0 = arith.constant 0 : i32
    %c0_i32_1 = arith.constant 0 : i32
    return %arg1, %c0_i32, %c0_i32_0 : i32, i32, i32
  }
  func.func @transform_2(%arg0: i32, %arg1: i32) -> (i32, i32) {
    %c0_i32 = arith.constant 0 : i32
    %c0_i32_0 = arith.constant 0 : i32
    %c0_i32_1 = arith.constant 0 : i32
    return %c0_i32, %c0_i32_0 : i32, i32
  }
  func.func @transform_3(%arg0: i32, %arg1: i32) -> (i32, i32) {
    %c0_i32 = arith.constant 0 : i32
    %c0_i32_0 = arith.constant 0 : i32
    %c0_i32_1 = arith.constant 0 : i32
    return %c0_i32, %c0_i32_0 : i32, i32
  }
  func.func @transform_4(%arg0: i32, %arg1: i32) -> (i32, i32) {
    %c0_i32 = arith.constant 0 : i32
    %c0_i32_0 = arith.constant 0 : i32
    %c0_i32_1 = arith.constant 0 : i32
    return %c0_i32, %c0_i32_0 : i32, i32
  }
  func.func @transform_5(%arg0: i32, %arg1: i32) -> (i32, i32) {
    %c0_i32 = arith.constant 0 : i32
    %c0_i32_0 = arith.constant 0 : i32
    %c0_i32_1 = arith.constant 0 : i32
    return %c0_i32, %c0_i32_0 : i32, i32
  }
  func.func @transform_6(%arg0: i32, %arg1: i32) -> (i32, i32, i32) {
    %c0_i32 = arith.constant 0 : i32
    %c0_i32_0 = arith.constant 0 : i32
    %c0_i32_1 = arith.constant 0 : i32
    return %arg0, %c0_i32, %c0_i32_0 : i32, i32, i32
  }
}

</mosaic_0001>

<llo_original>
// kernel: tpu_custom_call.1
$region0: #{tpu_custom_call.1}
  #allocation0 [shape = 'u32[]', space=smem, size = 0x4, offset = 0x4, fixed_abs, tag = 'smem constant byte address 0x4 - core index']
  #allocation1 [shape = 'u32[72,128]{1,0:T(1,128)}', space=vmem, size = 0x9000, scoped, tag = 'internal scratch']
  #allocation2 [shape = 'f32[64,128]{1,0:T(8,128)}', space=vmem, size = 0x8000, scoped, tag = 'scratch operand']
  #allocation3 [shape = 'f32[64,1]{1,0:T(8,128)}', space=vmem, size = 0x8000, scoped, tag = 'scratch operand']
  %s0 = inlined_call_operand.hbm [shape: f32[2,64,128], index: 0, kind: input, shape index: {}]
  %s1 = inlined_call_operand.hbm [shape: f32[2,64,128], index: 1, kind: input, shape index: {}]
  %s2 = inlined_call_operand.hbm [shape: f32[128,128], index: 2, kind: input, shape index: {}]
  %s3 = inlined_call_operand.vmem [shape: f32[1,128], index: 3, kind: input, shape index: {}]
  %s4 = inlined_call_operand.hbm [shape: f32[128,128], index: 4, kind: input, shape index: {}]
  %s5 = inlined_call_operand.vmem [shape: f32[1,128], index: 5, kind: input, shape index: {}]
  %s6 = inlined_call_operand.hbm [shape: f32[2,64,128], index: 6, kind: output, shape index: {}]
  %s7 = sld [smem:[#allocation0]]
  $region81: #{tpu_custom_call.1} parent=0
    _
  %s9 = ssub.s32 1, %s7
  %s10 = scalar_select 0, %s9, %s7
  $region1: #{tpu_custom_call.1} parent=0
    #allocation4 [shape = 'u8[65536]{0}', space=vmem, size = 0x10000, scoped, tag = 'input window, operand 0']
    #allocation5 [shape = 's32[2]{0}', space=sflag, size = 0x8, scoped, tag = 'scoped memory for tpu_custom_call.1']
    #allocation6 [shape = 's32[2]{0}', space=sflag, size = 0x8, scoped, tag = 'scoped memory for tpu_custom_call.1']
    #allocation7 [shape = 'u8[65536]{0}', space=vmem, size = 0x10000, scoped, tag = 'input window, operand 1']
    #allocation8 [shape = 's32[2]{0}', space=sflag, size = 0x8, scoped, tag = 'scoped memory for tpu_custom_call.1']
    #allocation9 [shape = 'u8[65536]{0}', space=vmem, size = 0x10000, scoped, tag = 'input window, operand 2, single buffered']
    #allocation10 [shape = 'u8[65536]{0}', space=vmem, size = 0x10000, scoped, tag = 'input window, operand 4, single buffered']
    #allocation11 [shape = 's32[1]{0}', space=sflag, size = 0x4, scoped, tag = 'scoped memory for tpu_custom_call.1']
    #allocation12 [shape = 'u8[65536]{0}', space=vmem, size = 0x10000, scoped, tag = 'output window, operand 0']
    %11 = vsyncpa [#allocation5], 0
    %s12 = scalar_lea.sflag [#allocation5], 1
    %13 = vsyncpa %s12, 0
    %14 = vsyncpa [#allocation8], 0
    %s15 = scalar_lea.sflag [#allocation8], 1
    %16 = vsyncpa %s15, 0
    %17 = vsyncpa [#allocation11], 0
    %18 = vsyncpa [#allocation6], 0
    %s19 = scalar_lea.sflag [#allocation6], 1
    %20 = vsyncpa %s19, 0
    loop: start=0, step=1, limit=6
    $region2: #{tpu_custom_call.1} parent=1 // loop_pre_header
      _
    $region3: #{tpu_custom_call.1} parent=1 // loop_header
      %s22 = sphi 0, %s26
      %p23 = scmp.ge.s32.totalorder %s22, 6
      %s29 = sphi 0, %s41
      %s30 = sphi 0, %s37
      %s31 = sphi 0, %s29
      %s32 = sphi 0, %s30
      %s33 = sphi 0, %s31
      %s34 = sphi 0, %s32
      %s44 = sphi 0, %s46
      %s47 = sphi 0, %s44
      %s48 = sphi 0, %s47
      %s64 = sphi 0, %s48
      %s70 = sphi 0, %s72
      %s73 = sphi 0, %s70
      %s74 = sphi 0, %s73
      %s90 = sphi 0, %s74
      %s94 = sphi 0, %s94
      %s96 = sphi 0, %s94
      %s97 = sphi 0, %s96
      %s111 = sphi 0, %s97
      %s115 = sphi 0, %s115
      %s117 = sphi 0, %s115
      %s118 = sphi 0, %s117
      %s132 = sphi 0, %s118
      %s136 = sphi 0, %s136
      %s138 = sphi 0, %s136
      %s139 = sphi 0, %s138
      %s153 = sphi 0, %s139
      %s157 = sphi 0, %s157
      %s159 = sphi 0, %s157
      %s160 = sphi 0, %s159
      %s174 = sphi 0, %s160
      %s180 = sphi 0, %s182
      %s183 = sphi 0, %s180
      %s184 = sphi 0, %s183
      %s200 = sphi 0, %s184
    $region4: #{tpu_custom_call.1} parent=1 // loop_header_branch
      %25 = sbr.rel (%p23) target = $region8
    $region5: #{tpu_custom_call.1} parent=1 // loop_body
      %s27 = ssub.s32 %s22, 1
      %s28 = ssub.s32 %s22, 2
      %s35 = sadd.s32 1, %s30
      %p36 = scmp.ge.s32.totalorder %s35, 2
      %s37 = scalar_select %p36, 0, %s35
      %s38 = sadd.s32 1, %s29
      %s39 = scalar_select %p36, %s38, %s29
      %p40 = scmp.ge.s32.totalorder %s39, 2
      %s41 = scalar_select %p40, 0, %s39
      %s42 = ssub.s32 %s29, %s41
      %p43 = scmp.eq.s32.totalorder %s42, 0
      %s45 = sadd.s32 %s44, 1
      %s46 = scalar_select %p43, %s44, %s45
      %p49 = pneg %p43
      %p50 = scmp.eq.s32.totalorder %s22, 3
      %p51 = por %p49, %p50
      %p52 = scmp.ne.s32.totalorder %s44, %s47
      %p53 = scmp.eq.s32.totalorder %s22, 0
      %p54 = por %p52, %p53
      %p55 = scmp.ne.s32.totalorder %s44, %s47
      %p56 = scmp.eq.s32.totalorder %s27, 3
      %p57 = por %p55, %p56
      %p58 = scmp.ne.s32.totalorder %s47, %s48
      %p59 = scmp.eq.s32.totalorder %s27, 0
      %p60 = por %p58, %p59
      %p61 = scmp.ne.s32.totalorder %s47, %s48
      %p62 = scmp.eq.s32.totalorder %s28, 3
      %p63 = por %p61, %p62
      %p65 = scmp.ne.s32.totalorder %s48, %s64
      %p66 = scmp.eq.s32.totalorder %s28, 0
      %p67 = por %p65, %p66
      %s68 = ssub.s32 %s30, %s37
      %p69 = scmp.eq.s32.totalorder %s68, 0
      %s71 = sadd.s32 %s70, 1
      %s72 = scalar_select %p69, %s70, %s71
      %p75 = pneg %p69
      %p76 = scmp.eq.s32.totalorder %s22, 3
      %p77 = por %p75, %p76
      %p78 = scmp.ne.s32.totalorder %s70, %s73
      %p79 = scmp.eq.s32.totalorder %s22, 0
      %p80 = por %p78, %p79
      %p81 = scmp.ne.s32.totalorder %s70, %s73
      %p82 = scmp.eq.s32.totalorder %s27, 3
      %p83 = por %p81, %p82
      %p84 = scmp.ne.s32.totalorder %s73, %s74
      %p85 = scmp.eq.s32.totalorder %s27, 0
      %p86 = por %p84, %p85
      %p87 = scmp.ne.s32.totalorder %s73, %s74
      %p88 = scmp.eq.s32.totalorder %s28, 3
      %p89 = por %p87, %p88
      %p91 = scmp.ne.s32.totalorder %s74, %s90
      %p92 = scmp.eq.s32.totalorder %s28, 0
      %p93 = por %p91, %p92
      %s95 = sadd.s32 %s94, 1
      %p98 = scmp.eq.s32.totalorder %s22, 3
      %p99 = scmp.ne.s32.totalorder %s94, %s96
      %p100 = scmp.eq.s32.totalorder %s22, 0
      %p101 = por %p99, %p100
      %p102 = scmp.ne.s32.totalorder %s94, %s96
      %p103 = scmp.eq.s32.totalorder %s27, 3
      %p104 = por %p102, %p103
      %p105 = scmp.ne.s32.totalorder %s96, %s97
      %p106 = scmp.eq.s32.totalorder %s27, 0
      %p107 = por %p105, %p106
      %p108 = scmp.ne.s32.totalorder %s96, %s97
      %p109 = scmp.eq.s32.totalorder %s28, 3
      %p110 = por %p108, %p109
      %p112 = scmp.ne.s32.totalorder %s97, %s111
      %p113 = scmp.eq.s32.totalorder %s28, 0
      %p114 = por %p112, %p113
      %s116 = sadd.s32 %s115, 1
      %p119 = scmp.eq.s32.totalorder %s22, 3
      %p120 = scmp.ne.s32.totalorder %s115, %s117
      %p121 = scmp.eq.s32.totalorder %s22, 0
      %p122 = por %p120, %p121
      %p123 = scmp.ne.s32.totalorder %s115, %s117
      %p124 = scmp.eq.s32.totalorder %s27, 3
      %p125 = por %p123, %p124
      %p126 = scmp.ne.s32.totalorder %s117, %s118
      %p127 = scmp.eq.s32.totalorder %s27, 0
      %p128 = por %p126, %p127
      %p129 = scmp.ne.s32.totalorder %s117, %s118
      %p130 = scmp.eq.s32.totalorder %s28, 3
      %p131 = por %p129, %p130
      %p133 = scmp.ne.s32.totalorder %s118, %s132
      %p134 = scmp.eq.s32.totalorder %s28, 0
      %p135 = por %p133, %p134
      %s137 = sadd.s32 %s136, 1
      %p140 = scmp.eq.s32.totalorder %s22, 3
      %p141 = scmp.ne.s32.totalorder %s136, %s138
      %p142 = scmp.eq.s32.totalorder %s22, 0
      %p143 = por %p141, %p142
      %p144 = scmp.ne.s32.totalorder %s136, %s138
      %p145 = scmp.eq.s32.totalorder %s27, 3
      %p146 = por %p144, %p145
      %p147 = scmp.ne.s32.totalorder %s138, %s139
      %p148 = scmp.eq.s32.totalorder %s27, 0
      %p149 = por %p147, %p148
      %p150 = scmp.ne.s32.totalorder %s138, %s139
      %p151 = scmp.eq.s32.totalorder %s28, 3
      %p152 = por %p150, %p151
      %p154 = scmp.ne.s32.totalorder %s139, %s153
      %p155 = scmp.eq.s32.totalorder %s28, 0
      %p156 = por %p154, %p155
      %s158 = sadd.s32 %s157, 1
      %p161 = scmp.eq.s32.totalorder %s22, 3
      %p162 = scmp.ne.s32.totalorder %s157, %s159
      %p163 = scmp.eq.s32.totalorder %s22, 0
      %p164 = por %p162, %p163
      %p165 = scmp.ne.s32.totalorder %s157, %s159
      %p166 = scmp.eq.s32.totalorder %s27, 3
      %p167 = por %p165, %p166
      %p168 = scmp.ne.s32.totalorder %s159, %s160
      %p169 = scmp.eq.s32.totalorder %s27, 0
      %p170 = por %p168, %p169
      %p171 = scmp.ne.s32.totalorder %s159, %s160
      %p172 = scmp.eq.s32.totalorder %s28, 3
      %p173 = por %p171, %p172
      %p175 = scmp.ne.s32.totalorder %s160, %s174
      %p176 = scmp.eq.s32.totalorder %s28, 0
      %p177 = por %p175, %p176
      %s178 = ssub.s32 %s29, %s41
      %p179 = scmp.eq.s32.totalorder %s178, 0
      %s181 = sadd.s32 %s180, 1
      %s182 = scalar_select %p179, %s180, %s181
      %p185 = pneg %p179
      %p186 = scmp.eq.s32.totalorder %s22, 3
      %p187 = por %p185, %p186
      %p188 = scmp.ne.s32.totalorder %s180, %s183
      %p189 = scmp.eq.s32.totalorder %s22, 0
      %p190 = por %p188, %p189
      %p191 = scmp.ne.s32.totalorder %s180, %s183
      %p192 = scmp.eq.s32.totalorder %s27, 3
      %p193 = por %p191, %p192
      %p194 = scmp.ne.s32.totalorder %s183, %s184
      %p195 = scmp.eq.s32.totalorder %s27, 0
      %p196 = por %p194, %p195
      %p197 = scmp.ne.s32.totalorder %s183, %s184
      %p198 = scmp.eq.s32.totalorder %s28, 3
      %p199 = por %p197, %p198
      %p201 = scmp.ne.s32.totalorder %s184, %s200
      %p202 = scmp.eq.s32.totalorder %s28, 0
      %p203 = por %p201, %p202
      %p204 = scmp.le.s32.totalorder 1, %s22
      %p205 = scmp.lt.s32.totalorder %s22, 5
      %p206 = pnand %p204, %p205
      %p207 = pneg %p206
      // Predicated region
      $region9: #{tpu_custom_call.1} parent=5 // pred_check
        _
      $region10: #{tpu_custom_call.1} parent=5 // pred_check_branch
        %209 = sbr.rel (%p206) target = $region12
      $region11: #{tpu_custom_call.1} parent=5 // pred_region
        %s210 = ssub.s32 %s22, 1
        // Predicated region
        $region13: #{tpu_custom_call.1} parent=11 // pred_check
          %p211 = pneg %p107
        $region14: #{tpu_custom_call.1} parent=11 // pred_check_branch
          %213 = sbr.rel (%p211) target = $region16
        $region15: #{tpu_custom_call.1} parent=11 // pred_region
          %215 = vsyncadd [#allocation8], 0
          %s216 = sshll.u32 %s2, 4
          %s217 = int_to_ptr.hbm [resolvable:$true] %s216
          %s218 = sshll.u32 [#allocation9], 4
          %s219 = int_to_ptr.vmem [resolvable:$true] %s218
          %224 = dma.hbm_to_vmem [thread:$0]  %s217, 2048, %s219, [#allocation8], 128, 128, 8
        $region16: #{tpu_custom_call.1} parent=11 // pred_fallthru
          _
        // Predicated region
        $region17: #{tpu_custom_call.1} parent=11 // pred_check
          %p225 = pneg %p128
        $region18: #{tpu_custom_call.1} parent=11 // pred_check_branch
          %227 = sbr.rel (%p225) target = $region20
        $region19: #{tpu_custom_call.1} parent=11 // pred_region
          _
        $region20: #{tpu_custom_call.1} parent=11 // pred_fallthru
          _
        // Predicated region
        $region21: #{tpu_custom_call.1} parent=11 // pred_check
          %p228 = pneg %p149
        $region22: #{tpu_custom_call.1} parent=11 // pred_check_branch
          %230 = sbr.rel (%p228) target = $region24
        $region23: #{tpu_custom_call.1} parent=11 // pred_region
          %232 = vsyncadd [#allocation11], 0
          %s233 = sshll.u32 %s4, 4
          %s234 = int_to_ptr.hbm [resolvable:$true] %s233
          %s235 = sshll.u32 [#allocation10], 4
          %s236 = int_to_ptr.vmem [resolvable:$true] %s235
          %241 = dma.hbm_to_vmem [thread:$0]  %s234, 2048, %s236, [#allocation11], 128, 128, 8
        $region24: #{tpu_custom_call.1} parent=11 // pred_fallthru
          _
        // Predicated region
        $region25: #{tpu_custom_call.1} parent=11 // pred_check
          %p242 = pneg %p170
        $region26: #{tpu_custom_call.1} parent=11 // pred_check_branch
          %244 = sbr.rel (%p242) target = $region28
        $region27: #{tpu_custom_call.1} parent=11 // pred_region
          _
        $region28: #{tpu_custom_call.1} parent=11 // pred_fallthru
          _
      $region12: #{tpu_custom_call.1} parent=5 // pred_fallthru
        _
      %p245 = scmp.lt.s32.totalorder %s22, 4
      // Predicated region
      $region29: #{tpu_custom_call.1} parent=5 // pred_check
        %p246 = pneg %p245
      $region30: #{tpu_custom_call.1} parent=5 // pred_check_branch
        %248 = sbr.rel (%p246) target = $region32
      $region31: #{tpu_custom_call.1} parent=5 // pred_region
        // Predicated region
        $region33: #{tpu_custom_call.1} parent=31 // pred_check
          %p249 = pneg %p54
        $region34: #{tpu_custom_call.1} parent=31 // pred_check_branch
          %251 = sbr.rel (%p249) target = $region36
        $region35: #{tpu_custom_call.1} parent=31 // pred_region
          %s252 = sand.u32 %s44, 1
          %s253 = scalar_lea.sflag [#allocation5], %s252
          %s254 = sand.u32 %s44, 1
          %s255 = smul.addr %s254, 64
          %s256 = scalar_lea.vmem [#allocation4], %s255
          %258 = vsyncadd %s253, 0
          %s259 = smul.addr %s29, 8
          %s260 = smul.addr %s259, 8
          %s261 = scalar_lea.hbm %s0, %s260
          %s262 = sshll.u32 %s261, 4
          %s263 = int_to_ptr.hbm [resolvable:$true] %s262
          %s264 = sshll.u32 %s256, 4
          %s265 = int_to_ptr.vmem [resolvable:$true] %s264
          %270 = dma.hbm_to_vmem [thread:$0]  %s263, 1024, %s265, %s253, 128, 128, 8
        $region36: #{tpu_custom_call.1} parent=31 // pred_fallthru
          _
        // Predicated region
        $region37: #{tpu_custom_call.1} parent=31 // pred_check
          %p271 = pneg %p80
        $region38: #{tpu_custom_call.1} parent=31 // pred_check_branch
          %273 = sbr.rel (%p271) target = $region40
        $region39: #{tpu_custom_call.1} parent=31 // pred_region
          %s274 = sand.u32 %s22, 1
          %s275 = scalar_lea.sflag [#allocation8], %s274
          %s276 = sand.u32 %s70, 1
          %s277 = smul.addr %s276, 64
          %s278 = scalar_lea.vmem [#allocation7], %s277
          %280 = vsyncadd %s275, 0
          %s281 = smul.addr %s30, 8
          %s282 = smul.addr %s281, 8
          %s283 = scalar_lea.hbm %s1, %s282
          %s284 = sshll.u32 %s283, 4
          %s285 = int_to_ptr.hbm [resolvable:$true] %s284
          %s286 = sshll.u32 %s278, 4
          %s287 = int_to_ptr.vmem [resolvable:$true] %s286
          %292 = dma.hbm_to_vmem [thread:$0]  %s285, 1024, %s287, %s275, 128, 128, 8
        $region40: #{tpu_custom_call.1} parent=31 // pred_fallthru
          _
      $region32: #{tpu_custom_call.1} parent=5 // pred_fallthru
        _
      %p293 = scmp.le.s32.totalorder 1, %s22
      %p294 = scmp.lt.s32.totalorder %s22, 5
      %p295 = pnand %p293, %p294
      %p296 = pneg %p295
      // Predicated region
      $region41: #{tpu_custom_call.1} parent=5 // pred_check
        _
      $region42: #{tpu_custom_call.1} parent=5 // pred_check_branch
        %298 = sbr.rel (%p295) target = $region44
      $region43: #{tpu_custom_call.1} parent=5 // pred_region
        %s299 = ssub.s32 %s22, 1
        %s300 = sand.u32 %s47, 1
        %s301 = scalar_lea.sflag [#allocation5], %s300
        %s302 = sand.u32 %s47, 1
        %s303 = smul.addr %s302, 64
        %s304 = scalar_lea.vmem [#allocation4], %s303
        // Predicated region
        $region45: #{tpu_custom_call.1} parent=43 // pred_check
          %p305 = pneg %p60
        $region46: #{tpu_custom_call.1} parent=43 // pred_check_branch
          %307 = sbr.rel (%p305) target = $region48
        $region47: #{tpu_custom_call.1} parent=43 // pred_region
          %309 = dma.done %s301, 1024
        $region48: #{tpu_custom_call.1} parent=43 // pred_fallthru
          _
        %s310 = sand.u32 %s27, 1
        %s311 = scalar_lea.sflag [#allocation8], %s310
        %s312 = sand.u32 %s73, 1
        %s313 = smul.addr %s312, 64
        %s314 = scalar_lea.vmem [#allocation7], %s313
        // Predicated region
        $region49: #{tpu_custom_call.1} parent=43 // pred_check
          %p315 = pneg %p86
        $region50: #{tpu_custom_call.1} parent=43 // pred_check_branch
          %317 = sbr.rel (%p315) target = $region52
        $region51: #{tpu_custom_call.1} parent=43 // pred_region
          %319 = dma.done %s311, 1024
        $region52: #{tpu_custom_call.1} parent=43 // pred_fallthru
          _
        // Predicated region
        $region53: #{tpu_custom_call.1} parent=43 // pred_check
          %p320 = pneg %p107
        $region54: #{tpu_custom_call.1} parent=43 // pred_check_branch
          %322 = sbr.rel (%p320) target = $region56
        $region55: #{tpu_custom_call.1} parent=43 // pred_region
          %324 = dma.done [#allocation8], 2048
        $region56: #{tpu_custom_call.1} parent=43 // pred_fallthru
          _
        // Predicated region
        $region57: #{tpu_custom_call.1} parent=43 // pred_check
          %p325 = pneg %p149
        $region58: #{tpu_custom_call.1} parent=43 // pred_check_branch
          %327 = sbr.rel (%p325) target = $region60
        $region59: #{tpu_custom_call.1} parent=43 // pred_region
          %329 = dma.done [#allocation11], 2048
        $region60: #{tpu_custom_call.1} parent=43 // pred_fallthru
          _
        %s330 = sand.u32 %s47, 1
        %s331 = scalar_lea.sflag [#allocation5], %s330
        %s332 = sand.u32 %s47, 1
        %s333 = smul.addr %s332, 64
        %s334 = scalar_lea.vmem [#allocation4], %s333
        %p335 = pneg %p60
        %p336 = pneg %p57
        %s337 = sand.u32 %s27, 1
        %s338 = scalar_lea.sflag [#allocation8], %s337
        %s339 = sand.u32 %s73, 1
        %s340 = smul.addr %s339, 64
        %s341 = scalar_lea.vmem [#allocation7], %s340
        %p342 = pneg %p86
        %p343 = pneg %p83
        %p344 = pneg %p107
        %p345 = pneg %p104
        %p346 = pneg %p128
        %p347 = pneg %p125
        %p348 = pneg %p149
        %p349 = pneg %p146
        %p350 = pneg %p170
        %p351 = pneg %p167
        %p352 = pneg %p196
        %p353 = pneg %p193
        %s354 = sand.u32 %s183, 1
        %s355 = scalar_lea.sflag [#allocation6], %s354
        %s356 = sand.u32 %s183, 1
        %s357 = smul.addr %s356, 64
        %s358 = scalar_lea.vmem [#allocation12], %s357
        %p359 = scmp.eq.s32.totalorder %s32, 0
        // Predicated region
        $region61: #{tpu_custom_call.1} parent=43 // pred_check
          %p360 = pneg %p359
        $region62: #{tpu_custom_call.1} parent=43 // pred_check_branch
          %362 = sbr.rel (%p360) target = $region64
        $region63: #{tpu_custom_call.1} parent=43 // pred_region
          %v363 = vld [vmem:[%s304] sm:$0xff]
          %v364 = vld [vmem:[%s304 + $0x8] sm:$0xff]
          %v365 = vld [vmem:[%s304 + $0x10] sm:$0xff]
          %v366 = vld [vmem:[%s304 + $0x18] sm:$0xff]
          %v367 = vld [vmem:[%s304 + $0x20] sm:$0xff]
          %v368 = vld [vmem:[%s304 + $0x28] sm:$0xff]
          %v369 = vld [vmem:[%s304 + $0x30] sm:$0xff]
          %v370 = vld [vmem:[%s304 + $0x38] sm:$0xff]
          %v371 = vld [vmem:[#allocation9] sm:$0xff]
          %v372 = vld [vmem:[#allocation9 + $0x8] sm:$0xff]
          %v373 = vld [vmem:[#allocation9 + $0x10] sm:$0xff]
          %v374 = vld [vmem:[#allocation9 + $0x18] sm:$0xff]
          %v375 = vld [vmem:[#allocation9 + $0x20] sm:$0xff]
          %v376 = vld [vmem:[#allocation9 + $0x28] sm:$0xff]
          %v377 = vld [vmem:[#allocation9 + $0x30] sm:$0xff]
          %v378 = vld [vmem:[#allocation9 + $0x38] sm:$0xff]
          %v379 = vld [vmem:[#allocation9 + $0x40] sm:$0xff]
          %v380 = vld [vmem:[#allocation9 + $0x48] sm:$0xff]
          %v381 = vld [vmem:[#allocation9 + $0x50] sm:$0xff]
          %v382 = vld [vmem:[#allocation9 + $0x58] sm:$0xff]
          %v383 = vld [vmem:[#allocation9 + $0x60] sm:$0xff]
          %v384 = vld [vmem:[#allocation9 + $0x68] sm:$0xff]
          %v385 = vld [vmem:[#allocation9 + $0x70] sm:$0xff]
          %v386 = vld [vmem:[#allocation9 + $0x78] sm:$0xff]
          %v387 = vld [vmem:[%s3] sm:$0x1]
          %v389 = vperm.slane %v387, 0
          %391 = vmatpush.msra.mxu0 %v386
          %392 = vmatpush.msra.mxu0 %v385
          %393 = vmatpush.msra.mxu0 %v384
          %394 = vmatpush.msra.mxu0 %v383
          %395 = vmatpush.msra.mxu0 %v382
          %396 = vmatpush.msra.mxu0 %v381
          %397 = vmatpush.msra.mxu0 %v380
          %398 = vmatpush.msra.mxu0 %v379
          %399 = vmatpush.msra.mxu0 %v378
          %400 = vmatpush.msra.mxu0 %v377
          %401 = vmatpush.msra.mxu0 %v376
          %402 = vmatpush.msra.mxu0 %v375
          %403 = vmatpush.msra.mxu0 %v374
          %404 = vmatpush.msra.mxu0 %v373
          %405 = vmatpush.msra.mxu0 %v372
          %406 = vmatpush.msra.mxu0 %v371
          %407 = vmatmul.f32.gmra.mxu0 %v363
          %v408 = vpop.f32.mrf.mxu0
          %v409 = vadd.f32 %v389, %v408
          %410 = vmatmul.f32.gmra.mxu0 %v364
          %v411 = vpop.f32.mrf.mxu0
          %v412 = vadd.f32 %v389, %v411
          %413 = vmatmul.f32.gmra.mxu0 %v365
          %v414 = vpop.f32.mrf.mxu0
          %v415 = vadd.f32 %v389, %v414
          %416 = vmatmul.f32.gmra.mxu0 %v366
          %v417 = vpop.f32.mrf.mxu0
          %v418 = vadd.f32 %v389, %v417
          %419 = vmatmul.f32.gmra.mxu0 %v367
          %v420 = vpop.f32.mrf.mxu0
          %v421 = vadd.f32 %v389, %v420
          %422 = vmatmul.f32.gmra.mxu0 %v368
          %v423 = vpop.f32.mrf.mxu0
          %v424 = vadd.f32 %v389, %v423
          %425 = vmatmul.f32.gmra.mxu0 %v369
          %v426 = vpop.f32.mrf.mxu0
          %v427 = vadd.f32 %v389, %v426
          %428 = vmatmul.f32.gmra.mxu0 %v370
          %v429 = vpop.f32.mrf.mxu0
          %v430 = vadd.f32 %v389, %v429
          %431 = vdwg.mxu0
          %432 = vst [vmem:[#allocation2] sm:$0xff] %v409
          %433 = vst [vmem:[#allocation2 + $0x8] sm:$0xff] %v412
          %434 = vst [vmem:[#allocation2 + $0x10] sm:$0xff] %v415
          %435 = vst [vmem:[#allocation2 + $0x18] sm:$0xff] %v418
          %436 = vst [vmem:[#allocation2 + $0x20] sm:$0xff] %v421
          %437 = vst [vmem:[#allocation2 + $0x28] sm:$0xff] %v424
          %438 = vst [vmem:[#allocation2 + $0x30] sm:$0xff] %v427
          %439 = vst [vmem:[#allocation2 + $0x38] sm:$0xff] %v430
          %vm440 = vcmask 7168
          %441 = vst.msk [vmem:[#allocation3] sm:$0xff] %vm440, 0.0
          %442 = vst.msk [vmem:[#allocation3 + $0x8] sm:$0xff] %vm440, 0.0
          %443 = vst.msk [vmem:[#allocation3 + $0x10] sm:$0xff] %vm440, 0.0
          %444 = vst.msk [vmem:[#allocation3 + $0x18] sm:$0xff] %vm440, 0.0
          %445 = vst.msk [vmem:[#allocation3 + $0x20] sm:$0xff] %vm440, 0.0
          %446 = vst.msk [vmem:[#allocation3 + $0x28] sm:$0xff] %vm440, 0.0
          %447 = vst.msk [vmem:[#allocation3 + $0x30] sm:$0xff] %vm440, 0.0
          %448 = vst.msk [vmem:[#allocation3 + $0x38] sm:$0xff] %vm440, 0.0
        $region64: #{tpu_custom_call.1} parent=43 // pred_fallthru
          _
        %v449 = vld [vmem:[#allocation2] sm:$0xff]
        %v450 = vld [vmem:[#allocation2 + $0x8] sm:$0xff]
        %v451 = vld [vmem:[#allocation2 + $0x10] sm:$0xff]
        %v452 = vld [vmem:[#allocation2 + $0x18] sm:$0xff]
        %v453 = vld [vmem:[#allocation2 + $0x20] sm:$0xff]
        %v454 = vld [vmem:[#allocation2 + $0x28] sm:$0xff]
        %v455 = vld [vmem:[#allocation2 + $0x30] sm:$0xff]
        %v456 = vld [vmem:[#allocation2 + $0x38] sm:$0xff]
        %v457 = vld [vmem:[%s314] sm:$0xff]
        %v458 = vld [vmem:[%s314 + $0x8] sm:$0xff]
        %v459 = vld [vmem:[%s314 + $0x10] sm:$0xff]
        %v460 = vld [vmem:[%s314 + $0x18] sm:$0xff]
        %v461 = vld [vmem:[%s314 + $0x20] sm:$0xff]
        %v462 = vld [vmem:[%s314 + $0x28] sm:$0xff]
        %v463 = vld [vmem:[%s314 + $0x30] sm:$0xff]
        %v464 = vld [vmem:[%s314 + $0x38] sm:$0xff]
        %465 = vmatpush.xpose.msra.mxu0 0.0
        %466 = vmatpush.xpose.msra.mxu0 0.0
        %467 = vmatpush.xpose.msra.mxu0 0.0
        %468 = vmatpush.xpose.msra.mxu0 0.0
        %469 = vmatpush.xpose.msra.mxu0 0.0
        %470 = vmatpush.xpose.msra.mxu0 0.0
        %471 = vmatpush.xpose.msra.mxu0 0.0
        %472 = vmatpush.xpose.msra.mxu0 0.0
        %473 = vmatpush.xpose.msra.mxu0 %v464
        %474 = vmatpush.xpose.msra.mxu0 %v463
        %475 = vmatpush.xpose.msra.mxu0 %v462
        %476 = vmatpush.xpose.msra.mxu0 %v461
        %477 = vmatpush.xpose.msra.mxu0 %v460
        %478 = vmatpush.xpose.msra.mxu0 %v459
        %479 = vmatpush.xpose.msra.mxu0 %v458
        %480 = vmatpush.xpose.msra.mxu0 %v457
        %481 = vmatmul.f32.gmra.mxu0 %v449
        %v482 = vpop.f32.mrf.mxu0
        %v483 = vadd.f32 0.0, %v482
        %484 = vmatmul.f32.gmra.mxu0 %v450
        %v485 = vpop.f32.mrf.mxu0
        %v486 = vadd.f32 0.0, %v485
        %487 = vmatmul.f32.gmra.mxu0 %v451
        %v488 = vpop.f32.mrf.mxu0
        %v489 = vadd.f32 0.0, %v488
        %490 = vmatmul.f32.gmra.mxu0 %v452
        %v491 = vpop.f32.mrf.mxu0
        %v492 = vadd.f32 0.0, %v491
        %493 = vmatmul.f32.gmra.mxu0 %v453
        %v494 = vpop.f32.mrf.mxu0
        %v495 = vadd.f32 0.0, %v494
        %496 = vmatmul.f32.gmra.mxu0 %v454
        %v497 = vpop.f32.mrf.mxu0
        %v498 = vadd.f32 0.0, %v497
        %499 = vmatmul.f32.gmra.mxu0 %v455
        %v500 = vpop.f32.mrf.mxu0
        %v501 = vadd.f32 0.0, %v500
        %502 = vmatmul.f32.gmra.mxu0 %v456
        %v503 = vpop.f32.mrf.mxu0
        %v504 = vadd.f32 0.0, %v503
        %505 = vdwg.mxu0
        %vm506 = vcmask 523264
        %v507 = vsel %vm506, %v483, -inf
        %508 = vmax.xlane.f32.xlu0 %v507
        %v509 = vpop.xlane.xlu0 %508
        %v510 = vsel %vm506, %v486, -inf
        %511 = vmax.xlane.f32.xlu0 %v510
        %v512 = vpop.xlane.xlu0 %511
        %v513 = vsel %vm506, %v489, -inf
        %514 = vmax.xlane.f32.xlu0 %v513
        %v515 = vpop.xlane.xlu0 %514
        %v516 = vsel %vm506, %v492, -inf
        %517 = vmax.xlane.f32.xlu0 %v516
        %v518 = vpop.xlane.xlu0 %517
        %v519 = vsel %vm506, %v495, -inf
        %520 = vmax.xlane.f32.xlu0 %v519
        %v521 = vpop.xlane.xlu0 %520
        %v522 = vsel %vm506, %v498, -inf
        %523 = vmax.xlane.f32.xlu0 %v522
        %v524 = vpop.xlane.xlu0 %523
        %v525 = vsel %vm506, %v501, -inf
        %526 = vmax.xlane.f32.xlu0 %v525
        %v527 = vpop.xlane.xlu0 %526
        %v528 = vsel %vm506, %v504, -inf
        %529 = vmax.xlane.f32.xlu0 %v528
        %v530 = vpop.xlane.xlu0 %529
        %v531 = vld [vmem:[#allocation3] sm:$0xff]
        %v532 = vld [vmem:[#allocation3 + $0x8] sm:$0xff]
        %v533 = vld [vmem:[#allocation3 + $0x10] sm:$0xff]
        %v534 = vld [vmem:[#allocation3 + $0x18] sm:$0xff]
        %v535 = vld [vmem:[#allocation3 + $0x20] sm:$0xff]
        %v536 = vld [vmem:[#allocation3 + $0x28] sm:$0xff]
        %v537 = vld [vmem:[#allocation3 + $0x30] sm:$0xff]
        %v538 = vld [vmem:[#allocation3 + $0x38] sm:$0xff]
        %v539 = vadd.f32 %v531, %v509
        %v540 = vadd.f32 %v532, %v512
        %v541 = vadd.f32 %v533, %v515
        %v542 = vadd.f32 %v534, %v518
        %v543 = vadd.f32 %v535, %v521
        %v544 = vadd.f32 %v536, %v524
        %v545 = vadd.f32 %v537, %v527
        %v546 = vadd.f32 %v538, %v530
        %vm547 = vcmask 7168
        %548 = vst.msk [vmem:[#allocation3] sm:$0xff] %vm547, %v539
        %549 = vst.msk [vmem:[#allocation3 + $0x8] sm:$0xff] %vm547, %v540
        %550 = vst.msk [vmem:[#allocation3 + $0x10] sm:$0xff] %vm547, %v541
        %551 = vst.msk [vmem:[#allocation3 + $0x18] sm:$0xff] %vm547, %v542
        %552 = vst.msk [vmem:[#allocation3 + $0x20] sm:$0xff] %vm547, %v543
        %553 = vst.msk [vmem:[#allocation3 + $0x28] sm:$0xff] %vm547, %v544
        %554 = vst.msk [vmem:[#allocation3 + $0x30] sm:$0xff] %vm547, %v545
        %555 = vst.msk [vmem:[#allocation3 + $0x38] sm:$0xff] %vm547, %v546
        %p556 = scmp.eq.s32.totalorder %s32, 1
        // Predicated region
        $region65: #{tpu_custom_call.1} parent=43 // pred_check
          %p557 = pneg %p556
        $region66: #{tpu_custom_call.1} parent=43 // pred_check_branch
          %559 = sbr.rel (%p557) target = $region68
        $region67: #{tpu_custom_call.1} parent=43 // pred_region
          %v560 = vld [vmem:[#allocation3] sm:$0xff]
          %v561 = vld [vmem:[#allocation3 + $0x8] sm:$0xff]
          %v562 = vld [vmem:[#allocation3 + $0x10] sm:$0xff]
          %v563 = vld [vmem:[#allocation3 + $0x18] sm:$0xff]
          %v564 = vld [vmem:[#allocation3 + $0x20] sm:$0xff]
          %v565 = vld [vmem:[#allocation3 + $0x28] sm:$0xff]
          %v566 = vld [vmem:[#allocation3 + $0x30] sm:$0xff]
          %v567 = vld [vmem:[#allocation3 + $0x38] sm:$0xff]
          %v568 = vmul.f32 %v560, 0.088388346
          %v569 = vmul.f32 %v561, 0.088388346
          %v570 = vmul.f32 %v562, 0.088388346
          %v571 = vmul.f32 %v563, 0.088388346
          %v572 = vmul.f32 %v564, 0.088388346
          %v573 = vmul.f32 %v565, 0.088388346
          %v574 = vmul.f32 %v566, 0.088388346
          %v575 = vmul.f32 %v567, 0.088388346
          %v576 = vsel %vm547, %v568, -inf
          %v577 = vsel %vm547, %v569, -inf
          %v578 = vsel %vm547, %v570, -inf
          %v579 = vsel %vm547, %v571, -inf
          %v580 = vsel %vm547, %v572, -inf
          %v581 = vmax.f32 %v576, %v580
          %v582 = vsel %vm547, %v573, -inf
          %v583 = vmax.f32 %v577, %v582
          %v584 = vsel %vm547, %v574, -inf
          %v585 = vmax.f32 %v578, %v584
          %v586 = vsel %vm547, %v575, -inf
          %v587 = vmax.f32 %v579, %v586
          %v588 = vmax.f32 %v581, %v583
          %v589 = vmax.f32 %v585, %v587
          %v590 = vmax.f32 %v588, %v589
          %v591 = vrot.slane %v590, 4
          %v592 = vmax.f32 %v590, %v591
          %v593 = vrot.slane %v592, 2
          %v594 = vmax.f32 %v592, %v593
          %v595 = vrot.slane %v594, 1
          %v596 = vmax.f32 %v594, %v595
          %v597 = vsub.f32 %v568, %v596
          %v598 = vsub.f32 %v569, %v596
          %v599 = vsub.f32 %v570, %v596
          %v600 = vsub.f32 %v571, %v596
          %v601 = vsub.f32 %v572, %v596
          %v602 = vsub.f32 %v573, %v596
          %v603 = vsub.f32 %v574, %v596
          %v604 = vsub.f32 %v575, %v596
          %v605 = vmul.f32 %v597, 1.442695
          %v606 = vpow.pop %v605
          %v607 = vmul.f32 %v598, 1.442695
          %v608 = vpow.pop %v607
          %v609 = vmul.f32 %v599, 1.442695
          %v610 = vpow.pop %v609
          %v611 = vmul.f32 %v600, 1.442695
          %v612 = vpow.pop %v611
          %v613 = vmul.f32 %v601, 1.442695
          %v614 = vpow.pop %v613
          %v615 = vmul.f32 %v602, 1.442695
          %v616 = vpow.pop %v615
          %v617 = vmul.f32 %v603, 1.442695
          %v618 = vpow.pop %v617
          %v619 = vmul.f32 %v604, 1.442695
          %v620 = vpow.pop %v619
          %v621 = vsel %vm547, %v606, 0.0
          %v622 = vsel %vm547, %v608, 0.0
          %v623 = vadd.f32 %v621, %v622
          %v624 = vsel %vm547, %v610, 0.0
          %v625 = vadd.f32 %v623, %v624
          %v626 = vsel %vm547, %v612, 0.0
          %v627 = vadd.f32 %v625, %v626
          %v628 = vsel %vm547, %v614, 0.0
          %v629 = vadd.f32 %v627, %v628
          %v630 = vsel %vm547, %v616, 0.0
          %v631 = vadd.f32 %v629, %v630
          %v632 = vsel %vm547, %v618, 0.0
          %v633 = vadd.f32 %v631, %v632
          %v634 = vsel %vm547, %v620, 0.0
          %v635 = vadd.f32 %v633, %v634
          %v636 = vrot.slane %v635, 4
          %v637 = vadd.f32 %v635, %v636
          %v638 = vrot.slane %v637, 2
          %v639 = vadd.f32 %v637, %v638
          %v640 = vrot.slane %v639, 1
          %v641 = vadd.f32 %v639, %v640
          %v642 = vrcp.pop %v641
          %v643 = vmul.f32 %v641, %v642
          %v644 = vsub.f32 1.0, %v643
          %v645 = vmul.f32 %v642, %v644
          %v646 = vadd.f32 %v642, %v645
          %vm647 = vweird.f32 %v641
          %vm648 = vweird.f32 %v642
          %vm649 = vmor %vm647, %vm648
          %v650 = vsel %vm649, %v642, %v646
          %v651 = vand.u32 2147483647, %v641
          %vm652 = vcmp.eq.f32.partialorder %v651, 8.507059e+37
          %v653 = vand.u32 %v641, 2147483648
          %v654 = vor.u32 1.1754944e-38, %v653
          %v655 = vsel %vm652, %v654, %v650
          %v656 = vmul.f32 %v606, %v655
          %v657 = vmul.f32 %v608, %v655
          %v658 = vmul.f32 %v610, %v655
          %v659 = vmul.f32 %v612, %v655
          %v660 = vmul.f32 %v614, %v655
          %v661 = vmul.f32 %v616, %v655
          %v662 = vmul.f32 %v618, %v655
          %v663 = vmul.f32 %v620, %v655
          %v664 = vld [vmem:[%s304] sm:$0xff]
          %v665 = vld [vmem:[%s304 + $0x8] sm:$0xff]
          %v666 = vld [vmem:[%s304 + $0x10] sm:$0xff]
          %v667 = vld [vmem:[%s304 + $0x18] sm:$0xff]
          %v668 = vld [vmem:[%s304 + $0x20] sm:$0xff]
          %v669 = vld [vmem:[%s304 + $0x28] sm:$0xff]
          %v670 = vld [vmem:[%s304 + $0x30] sm:$0xff]
          %v671 = vld [vmem:[%s304 + $0x38] sm:$0xff]
          %673 = vset.pattern.permute.xlu0 0
          %674 = vperm.xlu0 %673, %v656
          %v675 = vpop.permute.xlu0 %674
          %678 = vset.pattern.permute.xlu0 0
          %679 = vperm.xlu0 %678, %v657
          %v680 = vpop.permute.xlu0 %679
          %683 = vset.pattern.permute.xlu0 0
          %684 = vperm.xlu0 %683, %v658
          %v685 = vpop.permute.xlu0 %684
          %688 = vset.pattern.permute.xlu0 0
          %689 = vperm.xlu0 %688, %v659
          %v690 = vpop.permute.xlu0 %689
          %693 = vset.pattern.permute.xlu0 0
          %694 = vperm.xlu0 %693, %v660
          %v695 = vpop.permute.xlu0 %694
          %698 = vset.pattern.permute.xlu0 0
          %699 = vperm.xlu0 %698, %v661
          %v700 = vpop.permute.xlu0 %699
          %703 = vset.pattern.permute.xlu0 0
          %704 = vperm.xlu0 %703, %v662
          %v705 = vpop.permute.xlu0 %704
          %708 = vset.pattern.permute.xlu0 0
          %709 = vperm.xlu0 %708, %v663
          %v710 = vpop.permute.xlu0 %709
          %v712 = vmul.f32 %v664, %v675
          %v713 = vmul.f32 %v665, %v680
          %v714 = vmul.f32 %v666, %v685
          %v715 = vmul.f32 %v667, %v690
          %v716 = vmul.f32 %v668, %v695
          %v717 = vmul.f32 %v669, %v700
          %v718 = vmul.f32 %v670, %v705
          %v719 = vmul.f32 %v671, %v710
          %v720 = vld [vmem:[#allocation10] sm:$0xff]
          %v721 = vld [vmem:[#allocation10 + $0x8] sm:$0xff]
          %v722 = vld [vmem:[#allocation10 + $0x10] sm:$0xff]
          %v723 = vld [vmem:[#allocation10 + $0x18] sm:$0xff]
          %v724 = vld [vmem:[#allocation10 + $0x20] sm:$0xff]
          %v725 = vld [vmem:[#allocation10 + $0x28] sm:$0xff]
          %v726 = vld [vmem:[#allocation10 + $0x30] sm:$0xff]
          %v727 = vld [vmem:[#allocation10 + $0x38] sm:$0xff]
          %v728 = vld [vmem:[#allocation10 + $0x40] sm:$0xff]
          %v729 = vld [vmem:[#allocation10 + $0x48] sm:$0xff]
          %v730 = vld [vmem:[#allocation10 + $0x50] sm:$0xff]
          %v731 = vld [vmem:[#allocation10 + $0x58] sm:$0xff]
          %v732 = vld [vmem:[#allocation10 + $0x60] sm:$0xff]
          %v733 = vld [vmem:[#allocation10 + $0x68] sm:$0xff]
          %v734 = vld [vmem:[#allocation10 + $0x70] sm:$0xff]
          %v735 = vld [vmem:[#allocation10 + $0x78] sm:$0xff]
          %v736 = vld [vmem:[%s5] sm:$0x1]
          %v738 = vperm.slane %v736, 0
          %740 = vmatpush.msra.mxu0 %v735
          %741 = vmatpush.msra.mxu0 %v734
          %742 = vmatpush.msra.mxu0 %v733
          %743 = vmatpush.msra.mxu0 %v732
          %744 = vmatpush.msra.mxu0 %v731
          %745 = vmatpush.msra.mxu0 %v730
          %746 = vmatpush.msra.mxu0 %v729
          %747 = vmatpush.msra.mxu0 %v728
          %748 = vmatpush.msra.mxu0 %v727
          %749 = vmatpush.msra.mxu0 %v726
          %750 = vmatpush.msra.mxu0 %v725
          %751 = vmatpush.msra.mxu0 %v724
          %752 = vmatpush.msra.mxu0 %v723
          %753 = vmatpush.msra.mxu0 %v722
          %754 = vmatpush.msra.mxu0 %v721
          %755 = vmatpush.msra.mxu0 %v720
          %756 = vmatmul.f32.gmra.mxu0 %v712
          %v757 = vpop.f32.mrf.mxu0
          %v758 = vadd.f32 %v738, %v757
          %759 = vmatmul.f32.gmra.mxu0 %v713
          %v760 = vpop.f32.mrf.mxu0
          %v761 = vadd.f32 %v738, %v760
          %762 = vmatmul.f32.gmra.mxu0 %v714
          %v763 = vpop.f32.mrf.mxu0
          %v764 = vadd.f32 %v738, %v763
          %765 = vmatmul.f32.gmra.mxu0 %v715
          %v766 = vpop.f32.mrf.mxu0
          %v767 = vadd.f32 %v738, %v766
          %768 = vmatmul.f32.gmra.mxu0 %v716
          %v769 = vpop.f32.mrf.mxu0
          %v770 = vadd.f32 %v738, %v769
          %771 = vmatmul.f32.gmra.mxu0 %v717
          %v772 = vpop.f32.mrf.mxu0
          %v773 = vadd.f32 %v738, %v772
          %774 = vmatmul.f32.gmra.mxu0 %v718
          %v775 = vpop.f32.mrf.mxu0
          %v776 = vadd.f32 %v738, %v775
          %777 = vmatmul.f32.gmra.mxu0 %v719
          %v778 = vpop.f32.mrf.mxu0
          %v779 = vadd.f32 %v738, %v778
          %780 = vdwg.mxu0
          %781 = vst [vmem:[%s358] sm:$0xff] %v758
          %782 = vst [vmem:[%s358 + $0x8] sm:$0xff] %v761
          %783 = vst [vmem:[%s358 + $0x10] sm:$0xff] %v764
          %784 = vst [vmem:[%s358 + $0x18] sm:$0xff] %v767
          %785 = vst [vmem:[%s358 + $0x20] sm:$0xff] %v770
          %786 = vst [vmem:[%s358 + $0x28] sm:$0xff] %v773
          %787 = vst [vmem:[%s358 + $0x30] sm:$0xff] %v776
          %788 = vst [vmem:[%s358 + $0x38] sm:$0xff] %v779
        $region68: #{tpu_custom_call.1} parent=43 // pred_fallthru
          _
        %s789 = sand.u32 %s183, 1
        %s790 = scalar_lea.sflag [#allocation6], %s789
        %s791 = sand.u32 %s183, 1
        %s792 = smul.addr %s791, 64
        %s793 = scalar_lea.vmem [#allocation12], %s792
        // Predicated region
        $region69: #{tpu_custom_call.1} parent=43 // pred_check
          %p794 = pneg %p193
        $region70: #{tpu_custom_call.1} parent=43 // pred_check_branch
          %796 = sbr.rel (%p794) target = $region72
        $region71: #{tpu_custom_call.1} parent=43 // pred_region
          %798 = vsyncadd %s790, 0
          %s799 = smul.addr %s31, 8
          %s800 = smul.addr %s799, 8
          %s801 = scalar_lea.hbm %s6, %s800
          %s802 = sshll.u32 %s793, 4
          %s803 = int_to_ptr.vmem [resolvable:$true] %s802
          %s804 = sshll.u32 %s801, 4
          %s805 = int_to_ptr.hbm [resolvable:$true] %s804
          %810 = dma.vmem_to_hbm [thread:$0]  %s803, 1024, %s805, %s790, 128, 128, 8
        $region72: #{tpu_custom_call.1} parent=43 // pred_fallthru
          _
      $region44: #{tpu_custom_call.1} parent=5 // pred_fallthru
        _
      %p811 = scmp.le.s32.totalorder 2, %s22
      // Predicated region
      $region73: #{tpu_custom_call.1} parent=5 // pred_check
        %p812 = pneg %p811
      $region74: #{tpu_custom_call.1} parent=5 // pred_check_branch
        %814 = sbr.rel (%p812) target = $region76
      $region75: #{tpu_custom_call.1} parent=5 // pred_region
        %s815 = ssub.s32 %s22, 2
        // Predicated region
        $region77: #{tpu_custom_call.1} parent=75 // pred_check
          %p816 = pneg %p199
        $region78: #{tpu_custom_call.1} parent=75 // pred_check_branch
          %818 = sbr.rel (%p816) target = $region80
        $region79: #{tpu_custom_call.1} parent=75 // pred_region
          %s819 = sand.u32 %s184, 1
          %s820 = scalar_lea.sflag [#allocation6], %s819
          %s821 = sand.u32 %s184, 1
          %s822 = smul.addr %s821, 64
          %s823 = scalar_lea.vmem [#allocation12], %s822
          %825 = dma.done %s820, 1024
        $region80: #{tpu_custom_call.1} parent=75 // pred_fallthru
          _
      $region76: #{tpu_custom_call.1} parent=5 // pred_fallthru
        _
    $region6: #{tpu_custom_call.1} parent=1 // loop_footer
      %s26 = sadd.s32 1, %s22
    $region7: #{tpu_custom_call.1} parent=1 // loop_footer_branch
      %21 = sbr.rel target = $region3
    $region8: #{tpu_custom_call.1} parent=1 // loop_exit
      _
    %826 = vsyncpa [#allocation5], 1
    %s827 = scalar_lea.sflag [#allocation5], 1
    %828 = vsyncpa %s827, 1
    %829 = vsyncpa [#allocation8], 1
    %s830 = scalar_lea.sflag [#allocation8], 1
    %831 = vsyncpa %s830, 1
    %832 = vsyncpa [#allocation11], 1
    %833 = vsyncpa [#allocation6], 1
    %s834 = scalar_lea.sflag [#allocation6], 1
    %835 = vsyncpa %s834, 1

</llo_original>
